<compile_context>
chip_gen: v5e
topology: v5e:2x2
jax: 0.10.0
libtpu: 0.0.40
codegen_flags: <defaults>
</compile_context>

<pallas_src>
import functools

import jax
import jax.numpy as jnp
from jax import lax
from jax.experimental import pallas as pl
from jax.experimental.pallas import tpu as pltpu


def _round_up(x, m):
    return (x + m - 1) // m * m


# ---------------------------------------------------------------------------
# Kernel 1: fused Q/K projection   qk = x @ [WqT | WkT] + [bq | bk]
#   x_ref  : (TR, Ep)      row tile of the flattened (B*Sp, Ep) input
#   wqk_ref: (Ep, 2*Ep)
#   bqk_ref: (1, 2*Ep)
#   qk_ref : (TR, 2*Ep)
# ---------------------------------------------------------------------------
def _qk_proj_kernel(x_ref, wqk_ref, bqk_ref, qk_ref):
    qk = jnp.dot(x_ref[...], wqk_ref[...], preferred_element_type=jnp.float32)
    qk_ref[...] = (qk + bqk_ref[...]).astype(qk_ref.dtype)


# ---------------------------------------------------------------------------
# Kernel 2: flash-style additive attention (online softmax over j-tiles)
#   q_ref  : (B, TI, Ep)   query tile   (first  half of qk)
#   k_ref  : (B, TJ, Ep)   key tile     (second half of qk)
#   xj_ref : (B, TJ, Ep)   value tile   (original input rows j)
#   w_ref  : (1, Ep)       weight row of Linear(E, 1)
#   bw_ref : (1,)  SMEM    bias of Linear(E, 1)  (cancels in softmax; kept
#                          for faithfulness, read on the scalar path)
#   o_ref  : (B, TI, Ep)
#   scratch: m (B,TI,1), l (B,TI,1), acc (B,TI,Ep)
# ---------------------------------------------------------------------------
def _attn_kernel(q_ref, k_ref, xj_ref, w_ref, bw_ref,
                 o_ref, m_sc, l_sc, acc_sc,
                 *, s_real, tile_j, mask_cols):
    j = pl.program_id(1)

    @pl.when(j == 0)
    def _init():
        m_sc[...] = jnp.full(m_sc.shape, -jnp.inf, dtype=m_sc.dtype)
        l_sc[...] = jnp.zeros(l_sc.shape, dtype=l_sc.dtype)
        acc_sc[...] = jnp.zeros(acc_sc.shape, dtype=acc_sc.dtype)

    q = q_ref[...]                                    # (B, TI, Ep)
    k = k_ref[...]                                    # (B, TJ, Ep)

    # Additive scores for this j-tile only (never an (S, S, E) cube in VMEM):
    #   s[b,i,jj] = sum_e w_e * tanh(q[b,i,e] + k[b,jj,e]) + bw
    # VPU multiply + XLU lane-reduce instead of an N=1 MXU matmul.
    t = jnp.tanh(q[:, :, None, :] + k[:, None, :, :])    # (B, TI, TJ, Ep)
    s = jnp.sum(t * w_ref[...], axis=-1)                 # (B, TI, TJ)
    s = s + bw_ref[0]                                    # scalar from SMEM

    if mask_cols:  # static: only when S was padded up to a tile multiple
        col = j * tile_j + lax.broadcasted_iota(jnp.int32, (1, 1, tile_j), 2)
        s = jnp.where(col < s_real, s, -1e30)

    # NOTE: the reference PyTorch forward discards masked_fill's result, so the
    # user-supplied mask intentionally has no effect here.

    # Online (flash) softmax update + attn @ x accumulation.
    m_prev = m_sc[...]
    m_new = jnp.maximum(m_prev, jnp.max(s, axis=-1, keepdims=True))
    alpha = jnp.exp(m_prev - m_new)
    p = jnp.exp(s - m_new)                                # (B, TI, TJ)
    l_sc[...] = alpha * l_sc[...] + jnp.sum(p, axis=-1, keepdims=True)
    acc_sc[...] = alpha * acc_sc[...] + jnp.einsum(
        "bij,bje->bie", p, xj_ref[...], preferred_element_type=jnp.float32)
    m_sc[...] = m_new

    @pl.when(j == pl.num_programs(1) - 1)
    def _finalize():
        inv_l = pl.reciprocal(l_sc[...], approx=True)
        o_ref[...] = (acc_sc[...] * inv_l).astype(o_ref.dtype)


# ---------------------------------------------------------------------------
# Wrapper
# ---------------------------------------------------------------------------
def self_attention(x, mask, wq, bq, wk, bk, ww, bw, *, seq_tile=128):
    """x: (B,S,E); mask: (B,S) bool (ignored: the reference forward never
    assigns masked_fill's result).  wq, wk: (E,E) Linear weights (out,in);
    bq, bk: (E,); ww: (1,E); bw: (1,).  Dropout = identity (eval)."""
    B, S, E = x.shape
    orig_dtype = x.dtype
    f32 = jnp.float32

    # Lane-dense padding: E -> multiple of 128; S -> multiple of the seq tile.
    ep = _round_up(E, 128)
    ts = min(seq_tile, _round_up(S, 8))
    sp = _round_up(S, ts)
    n_s = sp // ts

    xp = jnp.zeros((B, sp, ep), f32).at[:, :S, :E].set(x.astype(f32))

    # Fused Q/K weights: [WqT | WkT] (in, 2*out), zero-padded.
    wq_t = jnp.zeros((ep, ep), f32).at[:E, :E].set(jnp.asarray(wq, f32).T)
    wk_t = jnp.zeros((ep, ep), f32).at[:E, :E].set(jnp.asarray(wk, f32).T)
    w_qk = jnp.concatenate([wq_t, wk_t], axis=1)               # (Ep, 2*Ep)
    b_qk = (jnp.zeros((1, 2 * ep), f32)
            .at[0, :E].set(jnp.asarray(bq, f32))
            .at[0, ep:ep + E].set(jnp.asarray(bk, f32)))
    w_row = jnp.zeros((1, ep), f32).at[0, :E].set(jnp.asarray(ww, f32).reshape(E))
    bw_s = jnp.asarray(bw, f32).reshape(1)

    vmem_limit = 32 * 1024 * 1024

    # ---- Kernel 1: fused Q/K projection on the flattened (B*Sp, Ep) rows ----
    x2 = xp.reshape(B * sp, ep)
    tr = B * ts if B * ts <= 1024 else ts          # row tile; divides B*sp
    n_r = (B * sp) // tr
    proj_cost = pl.CostEstimate(
        flops=2 * B * sp * ep * 2 * ep,
        transcendentals=0,
        bytes_accessed=4 * (B * sp * ep + n_r * ep * 2 * ep + B * sp * 2 * ep))
    qk2 = pl.pallas_call(
        _qk_proj_kernel,
        out_shape=jax.ShapeDtypeStruct((B * sp, 2 * ep), f32),
        grid_spec=pltpu.PrefetchScalarGridSpec(
            num_scalar_prefetch=0,
            grid=(n_r,),
            in_specs=[
                pl.BlockSpec((tr, ep), lambda r: (r, 0)),
                pl.BlockSpec((ep, 2 * ep), lambda r: (0, 0)),
                pl.BlockSpec((1, 2 * ep), lambda r: (0, 0)),
            ],
            out_specs=pl.BlockSpec((tr, 2 * ep), lambda r: (r, 0)),
        ),
        compiler_params=pltpu.CompilerParams(
            dimension_semantics=("parallel",),
            vmem_limit_bytes=vmem_limit),
        cost_estimate=proj_cost,
    )(x2, w_qk, b_qk)
    qk = qk2.reshape(B, sp, 2 * ep)

    # ---- Kernel 2: flash-style additive attention ----------------------------
    attn_cost = pl.CostEstimate(
        flops=5 * B * sp * sp * ep,
        transcendentals=B * sp * sp * (ep + 1),
        bytes_accessed=4 * (2 * B * sp * ep + n_s * 2 * B * sp * ep + B * sp * ep))
    kernel = functools.partial(_attn_kernel, s_real=S, tile_j=ts,
                               mask_cols=(sp != S))
    out_p = pl.pallas_call(
        kernel,
        out_shape=jax.ShapeDtypeStruct((B, sp, ep), orig_dtype),
        grid_spec=pltpu.PrefetchScalarGridSpec(
            num_scalar_prefetch=0,
            grid=(n_s, n_s),                        # (i tiles, j tiles)
            in_specs=[
                pl.BlockSpec((B, ts, ep), lambda i, j: (0, i, 0)),   # q half of qk
                pl.BlockSpec((B, ts, ep), lambda i, j: (0, j, 1)),   # k half of qk
                pl.BlockSpec((B, ts, ep), lambda i, j: (0, j, 0)),   # x j-tile (values)
                pl.BlockSpec((1, ep), lambda i, j: (0, 0)),          # w of Linear(E,1)
                pl.BlockSpec(memory_space=pltpu.MemorySpace.SMEM),   # bw scalar
            ],
            out_specs=pl.BlockSpec((B, ts, ep), lambda i, j: (0, i, 0)),
            scratch_shapes=[
                pltpu.VMEM((B, ts, 1), f32),     # running max
                pltpu.VMEM((B, ts, 1), f32),     # running denom
                pltpu.VMEM((B, ts, ep), f32),    # running attn @ x
            ],
        ),
        compiler_params=pltpu.CompilerParams(
            dimension_semantics=("parallel", "arbitrary"),
            vmem_limit_bytes=vmem_limit),
        cost_estimate=attn_cost,
    )(qk, qk, xp, w_row, bw_s)

    return out_p[:, :S, :E].astype(orig_dtype)


def _reference(x, mask, wq, bq, wk, bk, ww, bw):
    """Pure-JAX reference mirroring the PyTorch forward (eval mode)."""
    q = x @ wq.T + bq                                    # (B,S,E)
    k = x @ wk.T + bk                                    # (B,S,E)
    t = jnp.tanh(q[:, :, None, :] + k[:, None, :, :])    # (B,S,S,E)
    scores = jnp.einsum("bije,oe->bij", t, ww) + bw[0]   # (B,S,S)
    # masked_fill result is discarded in the reference -> no-op
    attn = jax.nn.softmax(scores, axis=-1)
    return attn @ x


if __name__ == "__main__":
    B, S, E = 2, 8, 32   # batch, sequence length, hiddenSize
    key = jax.random.PRNGKey(0)
    ks = jax.random.split(key, 8)

    x = jax.random.normal(ks[0], (B, S, E), dtype=jnp.float32)
    mask = jax.random.bernoulli(ks[1], 0.2, (B, S))      # ignored (see comments)

    wq = jax.random.normal(ks[2], (E, E), dtype=jnp.float32) * 0.1
    bq = jax.random.normal(ks[3], (E,), dtype=jnp.float32) * 0.1
    wk = jax.random.normal(ks[4], (E, E), dtype=jnp.float32) * 0.1
    bk = jax.random.normal(ks[5], (E,), dtype=jnp.float32) * 0.1
    ww = jax.random.normal(ks[6], (1, E), dtype=jnp.float32) * 0.1
    bw = jax.random.normal(ks[7], (1,), dtype=jnp.float32) * 0.1

    out = self_attention(x, mask, wq, bq, wk, bk, ww, bw)
    out = jax.block_until_ready(out)

    ref = _reference(x, mask, wq, bq, wk, bk, ww, bw)
    assert out.shape == (B, S, E)
    err = float(jnp.max(jnp.abs(out - ref)))
    # tolerance accounts for the EUP approximate reciprocal in the softmax
    assert jnp.allclose(out, ref, atol=2e-3, rtol=2e-3), f"mismatch, max abs err={err}"

    print("KERNEL_OK")
</pallas_src>

<mosaic_0001>
module attributes {stable_mosaic.version = 11 : i64} {
  func.func @_qk_proj_kernel(%arg0: i32, %arg1: memref<16x128xf32, #tpu.memory_space<vmem>>, %arg2: memref<128x256xf32, #tpu.memory_space<vmem>>, %arg3: memref<1x256xf32, #tpu.memory_space<vmem>>, %arg4: memref<16x256xf32, #tpu.memory_space<vmem>>) attributes {dimension_semantics = [#tpu.dimension_semantics<parallel>], iteration_bounds = array<i64: 1>, scalar_prefetch = 0 : i64, scratch_operands = 0 : i64, tpu.core_type = #tpu.core_type<tc>, window_params = [{transform_indices = @transform_0, window_bounds = array<i64: 16, 128>}, {pipeline_mode = #tpu.pipeline_mode<synchronous>, transform_indices = @transform_1, window_bounds = array<i64: 128, 256>}, {pipeline_mode = #tpu.pipeline_mode<synchronous>, transform_indices = @transform_2, window_bounds = array<i64: 1, 256>}, {transform_indices = @transform_3, window_bounds = array<i64: 16, 256>}]} {
    %c0 = arith.constant 0 : index
    %c0_0 = arith.constant 0 : index
    %0 = vector.load %arg1[%c0, %c0_0] : memref<16x128xf32, #tpu.memory_space<vmem>>, vector<16x128xf32>
    %c0_1 = arith.constant 0 : index
    %c0_2 = arith.constant 0 : index
    %1 = vector.load %arg2[%c0_1, %c0_2] : memref<128x256xf32, #tpu.memory_space<vmem>>, vector<128x256xf32>
    %cst = arith.constant dense<0.000000e+00> : vector<16x256xf32>
    %2 = tpu.matmul %0, %1, %cst {dimension_numbers = #tpu.dot_dimension_numbers<[1], [0], [0], [1], [0, 0, 1, 1], [], []>} : vector<16x128xf32>, vector<128x256xf32>, vector<16x256xf32> -> vector<16x256xf32>
    %c0_3 = arith.constant 0 : index
    %c0_4 = arith.constant 0 : index
    %3 = vector.load %arg3[%c0_3, %c0_4] : memref<1x256xf32, #tpu.memory_space<vmem>>, vector<1x256xf32>
    %4 = vector.broadcast %3 : vector<1x256xf32> to vector<16x256xf32>
    %5 = arith.addf %2, %4 : vector<16x256xf32>
    %c0_5 = arith.constant 0 : index
    %c0_6 = arith.constant 0 : index
    %6 = vector.load %arg4[%c0_5, %c0_6] : memref<16x256xf32, #tpu.memory_space<vmem>>, vector<16x256xf32>
    tpu.vector_store %arg4[%c0_5, %c0_6], %5 {strides = array<i32>} : memref<16x256xf32, #tpu.memory_space<vmem>>, vector<16x256xf32>,
    return
  }
  func.func @transform_0(%arg0: i32) -> (i32, i32) {
    %c0_i32 = arith.constant 0 : i32
    %c0_i32_0 = arith.constant 0 : i32
    return %arg0, %c0_i32 : i32, i32
  }
  func.func @transform_1(%arg0: i32) -> (i32, i32) {
    %c0_i32 = arith.constant 0 : i32
    %c0_i32_0 = arith.constant 0 : i32
    %c0_i32_1 = arith.constant 0 : i32
    return %c0_i32, %c0_i32_0 : i32, i32
  }
  func.func @transform_2(%arg0: i32) -> (i32, i32) {
    %c0_i32 = arith.constant 0 : i32
    %c0_i32_0 = arith.constant 0 : i32
    %c0_i32_1 = arith.constant 0 : i32
    return %c0_i32, %c0_i32_0 : i32, i32
  }
  func.func @transform_3(%arg0: i32) -> (i32, i32) {
    %c0_i32 = arith.constant 0 : i32
    %c0_i32_0 = arith.constant 0 : i32
    return %arg0, %c0_i32 : i32, i32
  }
}

</mosaic_0001>

<llo_original>
// kernel: tpu_custom_call.1
$region0: #{tpu_custom_call.1}
  #allocation0 [shape = 'u32[]', space=smem, size = 0x4, offset = 0x4, fixed_abs, tag = 'smem constant byte address 0x4 - core index']
  #allocation1 [shape = 'u32[72,128]{1,0:T(1,128)}', space=vmem, size = 0x9000, scoped, tag = 'internal scratch']
  %s0 = inlined_call_operand.hbm [shape: f32[16,128], index: 0, kind: input, shape index: {}]
  %s1 = inlined_call_operand.hbm [shape: f32[128,256], index: 1, kind: input, shape index: {}]
  %s2 = inlined_call_operand.hbm [shape: f32[1,256], index: 2, kind: input, shape index: {}]
  %s3 = inlined_call_operand.hbm [shape: f32[16,256], index: 3, kind: output, shape index: {}]
  %s4 = sld [smem:[#allocation0]]
  $region34: #{tpu_custom_call.1} parent=0
    _
  %s6 = ssub.s32 1, %s4
  %s7 = scalar_select 0, %s6, %s4
  $region1: #{tpu_custom_call.1} parent=0
    #allocation2 [shape = 'u8[8192]{0}', space=vmem, size = 0x2000, scoped, tag = 'input window, operand 0, single buffered']
    #allocation3 [shape = 's32[1]{0}', space=sflag, size = 0x4, scoped, tag = 'scoped memory for tpu_custom_call.1']
    #allocation4 [shape = 's32[1]{0}', space=sflag, size = 0x4, scoped, tag = 'scoped memory for tpu_custom_call.1']
    #allocation5 [shape = 'u8[131072]{0}', space=vmem, size = 0x20000, scoped, tag = 'input window, operand 1, single buffered']
    #allocation6 [shape = 's32[1]{0}', space=sflag, size = 0x4, scoped, tag = 'scoped memory for tpu_custom_call.1']
    #allocation7 [shape = 'u8[1024]{0}', space=vmem, size = 0x400, scoped, tag = 'input window, operand 2, single buffered']
    #allocation8 [shape = 'u8[16384]{0}', space=vmem, size = 0x4000, scoped, tag = 'output window, operand 0, single buffered']
    %8 = vsyncpa [#allocation3], 0
    %9 = vsyncpa [#allocation6], 0
    %10 = vsyncpa [#allocation4], 0
    // Predicated region
    $region2: #{tpu_custom_call.1} parent=1 // pred_check
      _
    $region3: #{tpu_custom_call.1} parent=1 // pred_check_branch
      %12 = sbr.rel (0) target = $region5
    $region4: #{tpu_custom_call.1} parent=1 // pred_region
      %14 = vsyncadd [#allocation3], 0
      %s15 = sshll.u32 %s0, 4
      %s16 = int_to_ptr.hbm [resolvable:$true] %s15
      %s17 = sshll.u32 [#allocation2], 4
      %s18 = int_to_ptr.vmem [resolvable:$true] %s17
      %23 = dma.hbm_to_vmem [thread:$0]  %s16, 256, %s18, [#allocation3], 128, 128, 8
    $region5: #{tpu_custom_call.1} parent=1 // pred_fallthru
      _
    // Predicated region
    $region6: #{tpu_custom_call.1} parent=1 // pred_check
      _
    $region7: #{tpu_custom_call.1} parent=1 // pred_check_branch
      %25 = sbr.rel (0) target = $region9
    $region8: #{tpu_custom_call.1} parent=1 // pred_region
      %27 = vsyncadd [#allocation6], 0
      %s28 = sshll.u32 %s1, 4
      %s29 = int_to_ptr.hbm [resolvable:$true] %s28
      %s30 = sshll.u32 [#allocation5], 4
      %s31 = int_to_ptr.vmem [resolvable:$true] %s30
      %36 = dma.hbm_to_vmem [thread:$0]  %s29, 4096, %s31, [#allocation6], 256, 256, 16
    $region9: #{tpu_custom_call.1} parent=1 // pred_fallthru
      _
    // Predicated region
    $region10: #{tpu_custom_call.1} parent=1 // pred_check
      _
    $region11: #{tpu_custom_call.1} parent=1 // pred_check_branch
      %38 = sbr.rel (0) target = $region13
    $region12: #{tpu_custom_call.1} parent=1 // pred_region
      %40 = vsyncadd [#allocation6], 0
      %s42 = sshll.u32 %s2, 4
      %s43 = int_to_ptr.hbm [resolvable:$true] %s42
      %s44 = sshll.u32 [#allocation7], 4
      %s45 = int_to_ptr.vmem [resolvable:$true] %s44
      %47 = dma.hbm_to_vmem [thread:$0]  %s43, 32, %s45, [#allocation6]
    $region13: #{tpu_custom_call.1} parent=1 // pred_fallthru
      _
    // Predicated region
    $region14: #{tpu_custom_call.1} parent=1 // pred_check
      _
    $region15: #{tpu_custom_call.1} parent=1 // pred_check_branch
      %49 = sbr.rel (0) target = $region17
    $region16: #{tpu_custom_call.1} parent=1 // pred_region
      %51 = dma.done [#allocation3], 256
    $region17: #{tpu_custom_call.1} parent=1 // pred_fallthru
      _
    // Predicated region
    $region18: #{tpu_custom_call.1} parent=1 // pred_check
      _
    $region19: #{tpu_custom_call.1} parent=1 // pred_check_branch
      %53 = sbr.rel (0) target = $region21
    $region20: #{tpu_custom_call.1} parent=1 // pred_region
      %55 = dma.done [#allocation6], 4096
    $region21: #{tpu_custom_call.1} parent=1 // pred_fallthru
      _
    // Predicated region
    $region22: #{tpu_custom_call.1} parent=1 // pred_check
      _
    $region23: #{tpu_custom_call.1} parent=1 // pred_check_branch
      %57 = sbr.rel (0) target = $region25
    $region24: #{tpu_custom_call.1} parent=1 // pred_region
      %59 = dma.done [#allocation6], 32
    $region25: #{tpu_custom_call.1} parent=1 // pred_fallthru
      _
    %v60 = vld [vmem:[#allocation2] sm:$0xff]
    %v61 = vld [vmem:[#allocation2 + $0x8] sm:$0xff]
    %v62 = vld [vmem:[#allocation5] sm:$0xff]
    %v63 = vld [vmem:[#allocation5 + $0x8] sm:$0xff]
    %v64 = vld [vmem:[#allocation5 + $0x10] sm:$0xff]
    %v65 = vld [vmem:[#allocation5 + $0x18] sm:$0xff]
    %v66 = vld [vmem:[#allocation5 + $0x20] sm:$0xff]
    %v67 = vld [vmem:[#allocation5 + $0x28] sm:$0xff]
    %v68 = vld [vmem:[#allocation5 + $0x30] sm:$0xff]
    %v69 = vld [vmem:[#allocation5 + $0x38] sm:$0xff]
    %v70 = vld [vmem:[#allocation5 + $0x40] sm:$0xff]
    %v71 = vld [vmem:[#allocation5 + $0x48] sm:$0xff]
    %v72 = vld [vmem:[#allocation5 + $0x50] sm:$0xff]
    %v73 = vld [vmem:[#allocation5 + $0x58] sm:$0xff]
    %v74 = vld [vmem:[#allocation5 + $0x60] sm:$0xff]
    %v75 = vld [vmem:[#allocation5 + $0x68] sm:$0xff]
    %v76 = vld [vmem:[#allocation5 + $0x70] sm:$0xff]
    %v77 = vld [vmem:[#allocation5 + $0x78] sm:$0xff]
    %v78 = vld [vmem:[#allocation5 + $0x80] sm:$0xff]
    %v79 = vld [vmem:[#allocation5 + $0x88] sm:$0xff]
    %v80 = vld [vmem:[#allocation5 + $0x90] sm:$0xff]
    %v81 = vld [vmem:[#allocation5 + $0x98] sm:$0xff]
    %v82 = vld [vmem:[#allocation5 + $0xa0] sm:$0xff]
    %v83 = vld [vmem:[#allocation5 + $0xa8] sm:$0xff]
    %v84 = vld [vmem:[#allocation5 + $0xb0] sm:$0xff]
    %v85 = vld [vmem:[#allocation5 + $0xb8] sm:$0xff]
    %v86 = vld [vmem:[#allocation5 + $0xc0] sm:$0xff]
    %v87 = vld [vmem:[#allocation5 + $0xc8] sm:$0xff]
    %v88 = vld [vmem:[#allocation5 + $0xd0] sm:$0xff]
    %v89 = vld [vmem:[#allocation5 + $0xd8] sm:$0xff]
    %v90 = vld [vmem:[#allocation5 + $0xe0] sm:$0xff]
    %v91 = vld [vmem:[#allocation5 + $0xe8] sm:$0xff]
    %v92 = vld [vmem:[#allocation5 + $0xf0] sm:$0xff]
    %v93 = vld [vmem:[#allocation5 + $0xf8] sm:$0xff]
    %v94 = vld [vmem:[#allocation7] sm:$0x3]
    %v96 = vperm.slane %v94, 0
    %v97 = vperm.slane %v94, 1
    %100 = vmatpush.msra.mxu0 %v92
    %101 = vmatpush.msra.mxu0 %v90
    %102 = vmatpush.msra.mxu0 %v88
    %103 = vmatpush.msra.mxu0 %v86
    %104 = vmatpush.msra.mxu0 %v84
    %105 = vmatpush.msra.mxu0 %v82
    %106 = vmatpush.msra.mxu0 %v80
    %107 = vmatpush.msra.mxu0 %v78
    %108 = vmatpush.msra.mxu0 %v76
    %109 = vmatpush.msra.mxu0 %v74
    %110 = vmatpush.msra.mxu0 %v72
    %111 = vmatpush.msra.mxu0 %v70
    %112 = vmatpush.msra.mxu0 %v68
    %113 = vmatpush.msra.mxu0 %v66
    %114 = vmatpush.msra.mxu0 %v64
    %115 = vmatpush.msra.mxu0 %v62
    %116 = vmatmul.f32.gmra.mxu0 %v60
    %v117 = vpop.f32.mrf.mxu0
    %v118 = vadd.f32 %v96, %v117
    %119 = vmatmul.f32.gmra.mxu0 %v61
    %v120 = vpop.f32.mrf.mxu0
    %v121 = vadd.f32 %v96, %v120
    %122 = vdwg.mxu0
    %123 = vmatpush.msra.mxu0 %v93
    %124 = vmatpush.msra.mxu0 %v91
    %125 = vmatpush.msra.mxu0 %v89
    %126 = vmatpush.msra.mxu0 %v87
    %127 = vmatpush.msra.mxu0 %v85
    %128 = vmatpush.msra.mxu0 %v83
    %129 = vmatpush.msra.mxu0 %v81
    %130 = vmatpush.msra.mxu0 %v79
    %131 = vmatpush.msra.mxu0 %v77
    %132 = vmatpush.msra.mxu0 %v75
    %133 = vmatpush.msra.mxu0 %v73
    %134 = vmatpush.msra.mxu0 %v71
    %135 = vmatpush.msra.mxu0 %v69
    %136 = vmatpush.msra.mxu0 %v67
    %137 = vmatpush.msra.mxu0 %v65
    %138 = vmatpush.msra.mxu0 %v63
    %139 = vmatmul.f32.gmra.mxu0 %v60
    %v140 = vpop.f32.mrf.mxu0
    %v141 = vadd.f32 %v97, %v140
    %142 = vmatmul.f32.gmra.mxu0 %v61
    %v143 = vpop.f32.mrf.mxu0
    %v144 = vadd.f32 %v97, %v143
    %145 = vdwg.mxu0
    %146 = vst [vmem:[#allocation8] sm:$0xff] %v118
    %147 = vst [vmem:[#allocation8 + $0x8] sm:$0xff] %v141
    %148 = vst [vmem:[#allocation8 + $0x10] sm:$0xff] %v121
    %149 = vst [vmem:[#allocation8 + $0x18] sm:$0xff] %v144
    // Predicated region
    $region26: #{tpu_custom_call.1} parent=1 // pred_check
      _
    $region27: #{tpu_custom_call.1} parent=1 // pred_check_branch
      %151 = sbr.rel (0) target = $region29
    $region28: #{tpu_custom_call.1} parent=1 // pred_region
      %153 = vsyncadd [#allocation4], 0
      %s154 = sshll.u32 [#allocation8], 4
      %s155 = int_to_ptr.vmem [resolvable:$true] %s154
      %s156 = sshll.u32 %s3, 4
      %s157 = int_to_ptr.hbm [resolvable:$true] %s156
      %162 = dma.vmem_to_hbm [thread:$0]  %s155, 512, %s157, [#allocation4], 256, 256, 16
    $region29: #{tpu_custom_call.1} parent=1 // pred_fallthru
      _
    // Predicated region
    $region30: #{tpu_custom_call.1} parent=1 // pred_check
      _
    $region31: #{tpu_custom_call.1} parent=1 // pred_check_branch
      %164 = sbr.rel (0) target = $region33
    $region32: #{tpu_custom_call.1} parent=1 // pred_region
      %166 = dma.done [#allocation4], 512
    $region33: #{tpu_custom_call.1} parent=1 // pred_fallthru
      _
    %167 = vsyncpa [#allocation3], 1
    %168 = vsyncpa [#allocation6], 1
    %169 = vsyncpa [#allocation4], 1

</llo_original>
